<compile_context>
chip_gen: v7x
topology: tpu7x:2x2x1
jax: 0.10.0
libtpu: 0.0.40
codegen_flags: <defaults>
</compile_context>

<pallas_src>
import functools

import jax
import jax.numpy as jnp
from jax import lax
from jax.experimental import pallas as pl
from jax.experimental.pallas import tpu as pltpu


def _round_up(n, m):
    return pl.cdiv(n, m) * m


def mlp_kernel(x_ref, w1_ref, b1_ref, w2_ref, b2_ref, w3t_ref, b3_ref, o_ref,
               *, cb):
    """One batch tile.  x_ref: (F, TB) with batch on lanes; o_ref: (1, TB).

    VMEM-resident weights: w1_ref (H, F), b1_ref (H, 1), w2_ref (H, H),
    b2_ref (H, 1), w3t_ref (H, 1) (torch w3 transposed), b3_ref (1, 1) in SMEM.
    """
    f = x_ref.shape[0]
    tb = x_ref.shape[1]
    n_chunks = tb // cb  # static: cb divides tb by construction

    # Tiny weights: load once per grid step; they stay in vregs across the loop.
    w1 = w1_ref[...]
    b1 = b1_ref[...]
    w2 = w2_ref[...]
    b2 = b2_ref[...]
    w3t = w3t_ref[...]
    b3 = b3_ref[0, 0]

    def chunk_body(c, carry):
        s = pl.multiple_of(c * cb, 128)
        xt = x_ref[:, pl.ds(s, cb)]                      # (F, cb), batch on lanes

        # --- Layer 1 (K = F = 4): VPU broadcast FMAs (keeps the MXU free) ---
        h1 = b1                                          # (H, 1) -> broadcasts
        for k in range(f):
            h1 = h1 + w1[:, k:k + 1] * xt[k:k + 1, :]    # (H,1)*(1,cb) -> (H,cb)
        h1 = jnp.maximum(h1, 0.0)

        # --- Layer 2 (H x H): the only MXU matmul, f32 accumulation ---------
        h2 = jnp.dot(w2, h1, preferred_element_type=jnp.float32)    # (H, cb)
        h2 = jnp.maximum(h2 + b2, 0.0)

        # --- Layer 3 (M = 1): VPU multiply + XLU sublane reduce -------------
        y = jnp.sum(w3t * h2, axis=0, keepdims=True) + b3           # (1, cb)

        o_ref[:, pl.ds(s, cb)] = y.astype(o_ref.dtype)
        return carry

    lax.fori_loop(0, n_chunks, chunk_body, 0)


def deep_corrector_mlp(x, params, *, tb_max=65536, cb=512):
    """Forward pass.  x: (B, F=4) float32 (torch row layout) -> (B, 1) float32.

    params (torch nn.Linear layout): w1 (H, 4), b1 (H, 1), w2 (H, H),
    b2 (H, 1), w3 (1, H), b3 (1, 1).
    """
    assert cb % 128 == 0
    x = jnp.asarray(x, jnp.float32)
    B, F = x.shape
    w1, b1, w2, b2, w3, b3 = (params[k] for k in ("w1", "b1", "w2", "b2", "w3", "b3"))
    H = w1.shape[0]
    assert F == w1.shape[1]
    w3t = w3.reshape(H, 1)   # column form for the VPU/XLU layer-3 reduce (128 B)

    # ---- Batch tiling -------------------------------------------------------
    # n = number of 128-lane groups.  Choose the number of grid steps so each
    # tile is at most ~tb_max lanes (VMEM-sized), with >= 2 steps when there is
    # enough work so v7x's two TensorCores both get tiles on the "parallel" axis.
    n = pl.cdiv(B, 128)
    steps = pl.cdiv(n * 128, tb_max)
    if n >= 2:
        steps = max(steps, 2)
    tpg = _round_up(pl.cdiv(n, steps), cb // 128)   # lane-groups per tile (mult of cb)
    tb = tpg * 128                                   # tile width, multiple of cb
    bp = steps * tb                                  # padded batch (divisible by tb)

    # One fused transpose+pad pass to the (F, Bp) lane-major layout (zero pad,
    # padded columns are sliced off below, so they never affect valid outputs).
    xt = jnp.pad(x.T, ((0, 0), (0, bp - B)))

    full = lambda a: pl.BlockSpec(a.shape, lambda i: (0,) * a.ndim)

    # VMEM budget: double-buffered x tile (F*tb*4 B) + double-buffered output
    # tile (sublane-padded to 8 rows -> 8*tb*4 B) + weights + headroom.
    vmem_limit = int(2 * F * tb * 4 + 2 * 8 * tb * 4 + (4 << 20))

    out_t = pl.pallas_call(
        functools.partial(mlp_kernel, cb=cb),
        out_shape=jax.ShapeDtypeStruct((1, bp), jnp.float32),
        grid=(steps,),
        in_specs=[
            pl.BlockSpec((F, tb), lambda i: (0, i)),            # x tile, streamed
            full(w1), full(b1), full(w2), full(b2), full(w3t),  # resident weights
            pl.BlockSpec(memory_space=pltpu.MemorySpace.SMEM),  # b3 scalar
        ],
        out_specs=pl.BlockSpec((1, tb), lambda i: (0, i)),      # lane-dense output
        compiler_params=pltpu.CompilerParams(
            dimension_semantics=("parallel",),                  # 2 TCs on v7x
            vmem_limit_bytes=vmem_limit),
    )(xt, w1, b1, w2, b2, w3t, b3)

    # Drop batch padding, restore (B, 1) row layout.
    return out_t[0, :B].reshape(B, 1)


def init_params(key, num_hidden_units=32):
    """Deterministic init mimicking torch.nn.Linear defaults:
    U(-1/sqrt(fan_in), 1/sqrt(fan_in)).  Weights torch-style (out, in),
    biases as (out, 1) columns."""
    def linear(key, fan_in, fan_out):
        kw, kb = jax.random.split(key)
        bound = 1.0 / (fan_in ** 0.5)
        w = jax.random.uniform(kw, (fan_out, fan_in), jnp.float32, -bound, bound)
        b = jax.random.uniform(kb, (fan_out, 1), jnp.float32, -bound, bound)
        return w, b

    k1, k2, k3 = jax.random.split(key, 3)
    w1, b1 = linear(k1, 4, num_hidden_units)
    w2, b2 = linear(k2, num_hidden_units, num_hidden_units)
    w3, b3 = linear(k3, num_hidden_units, 1)
    return dict(w1=w1, b1=b1, w2=w2, b2=b2, w3=w3, b3=b3)


def reference_forward(x, p):
    """Pure-JAX reference matching torch semantics (y = x @ W.T + b)."""
    h1 = jnp.maximum(x @ p["w1"].T + p["b1"].T, 0.0)
    h2 = jnp.maximum(h1 @ p["w2"].T + p["b2"].T, 0.0)
    return h2 @ p["w3"].T + p["b3"].T


if __name__ == "__main__":
    key = jax.random.PRNGKey(0)
    kx, kp, kx2 = jax.random.split(key, 3)

    params = init_params(kp, num_hidden_units=32)

    # Small shape consistent with the module: batch=8, in_features=4.
    x = jax.random.normal(kx, (8, 4), dtype=jnp.float32)
    out = jax.block_until_ready(deep_corrector_mlp(x, params))
    ref = reference_forward(x, params)
    assert out.shape == (8, 1)
    assert jnp.allclose(out, ref, atol=1e-5, rtol=1e-5)

    # Non-aligned, larger batch: exercises the multi-step grid, batch padding,
    # and the in-kernel chunk loop.
    x2 = jax.random.normal(kx2, (1000, 4), dtype=jnp.float32)
    out2 = jax.block_until_ready(deep_corrector_mlp(x2, params))
    ref2 = reference_forward(x2, params)
    assert out2.shape == (1000, 1)
    assert jnp.allclose(out2, ref2, atol=1e-5, rtol=1e-5)

    print("KERNEL_OK")
</pallas_src>

<mosaic_0001>
module attributes {stable_mosaic.version = 11 : i64} {
  func.func @mlp_kernel(%arg0: i32, %arg1: memref<4x512xf32, #tpu.memory_space<vmem>>, %arg2: memref<32x4xf32, #tpu.memory_space<vmem>>, %arg3: memref<32x1xf32, #tpu.memory_space<vmem>>, %arg4: memref<32x32xf32, #tpu.memory_space<vmem>>, %arg5: memref<32x1xf32, #tpu.memory_space<vmem>>, %arg6: memref<32x1xf32, #tpu.memory_space<vmem>>, %arg7: memref<1x1xf32, #tpu.memory_space<smem>>, %arg8: memref<1x512xf32, #tpu.memory_space<vmem>>) attributes {dimension_semantics = [#tpu.dimension_semantics<parallel>], iteration_bounds = array<i64: 1>, scalar_prefetch = 0 : i64, scratch_operands = 0 : i64, tpu.core_type = #tpu.core_type<tc>, window_params = [{transform_indices = @transform_0, window_bounds = array<i64: 4, 512>}, {pipeline_mode = #tpu.pipeline_mode<synchronous>, transform_indices = @transform_1, window_bounds = array<i64: 32, 4>}, {pipeline_mode = #tpu.pipeline_mode<synchronous>, transform_indices = @transform_2, window_bounds = array<i64: 32, 1>}, {pipeline_mode = #tpu.pipeline_mode<synchronous>, transform_indices = @transform_3, window_bounds = array<i64: 32, 32>}, {pipeline_mode = #tpu.pipeline_mode<synchronous>, transform_indices = @transform_4, window_bounds = array<i64: 32, 1>}, {pipeline_mode = #tpu.pipeline_mode<synchronous>, transform_indices = @transform_5, window_bounds = array<i64: 32, 1>}, {transform_indices = @transform_6, window_bounds = array<i64: 1, 1>}, {transform_indices = @transform_7, window_bounds = array<i64: 1, 512>}]} {
    %c0 = arith.constant 0 : index
    %c0_0 = arith.constant 0 : index
    %0 = vector.load %arg2[%c0, %c0_0] : memref<32x4xf32, #tpu.memory_space<vmem>>, vector<32x4xf32>
    %c0_1 = arith.constant 0 : index
    %c0_2 = arith.constant 0 : index
    %1 = vector.load %arg3[%c0_1, %c0_2] : memref<32x1xf32, #tpu.memory_space<vmem>>, vector<32x1xf32>
    %c0_3 = arith.constant 0 : index
    %c0_4 = arith.constant 0 : index
    %2 = vector.load %arg4[%c0_3, %c0_4] : memref<32x32xf32, #tpu.memory_space<vmem>>, vector<32x32xf32>
    %c0_5 = arith.constant 0 : index
    %c0_6 = arith.constant 0 : index
    %3 = vector.load %arg5[%c0_5, %c0_6] : memref<32x1xf32, #tpu.memory_space<vmem>>, vector<32x1xf32>
    %c0_7 = arith.constant 0 : index
    %c0_8 = arith.constant 0 : index
    %4 = vector.load %arg6[%c0_7, %c0_8] : memref<32x1xf32, #tpu.memory_space<vmem>>, vector<32x1xf32>
    %c0_9 = arith.constant 0 : index
    %c0_10 = arith.constant 0 : index
    %5 = memref.load %arg7[%c0_9, %c0_10] : memref<1x1xf32, #tpu.memory_space<smem>>
    %c0_i32 = arith.constant 0 : i32
    %c512_i32 = arith.constant 512 : i32
    %6 = arith.muli %c0_i32, %c512_i32 : i32
    %7 = tpu.assume_multiple %6, 128 : i32
    %c0_11 = arith.constant 0 : index
    %8 = arith.index_cast %7 : i32 to index
    %9 = vector.load %arg1[%c0_11, %8] : memref<4x512xf32, #tpu.memory_space<vmem>>, vector<4x512xf32>
    %10 = vector.extract_strided_slice %0 {offsets = [0, 0], sizes = [32, 1], strides = [1, 1]} : vector<32x4xf32> to vector<32x1xf32>
    %11 = vector.extract_strided_slice %9 {offsets = [0, 0], sizes = [1, 512], strides = [1, 1]} : vector<4x512xf32> to vector<1x512xf32>
    %12 = vector.broadcast %10 : vector<32x1xf32> to vector<32x512xf32>
    %13 = vector.broadcast %11 : vector<1x512xf32> to vector<32x512xf32>
    %14 = arith.mulf %12, %13 : vector<32x512xf32>
    %15 = vector.broadcast %1 : vector<32x1xf32> to vector<32x512xf32>
    %16 = arith.addf %15, %14 : vector<32x512xf32>
    %17 = vector.extract_strided_slice %0 {offsets = [0, 1], sizes = [32, 1], strides = [1, 1]} : vector<32x4xf32> to vector<32x1xf32>
    %18 = vector.extract_strided_slice %9 {offsets = [1, 0], sizes = [1, 512], strides = [1, 1]} : vector<4x512xf32> to vector<1x512xf32>
    %19 = vector.broadcast %17 : vector<32x1xf32> to vector<32x512xf32>
    %20 = vector.broadcast %18 : vector<1x512xf32> to vector<32x512xf32>
    %21 = arith.mulf %19, %20 : vector<32x512xf32>
    %22 = arith.addf %16, %21 : vector<32x512xf32>
    %23 = vector.extract_strided_slice %0 {offsets = [0, 2], sizes = [32, 1], strides = [1, 1]} : vector<32x4xf32> to vector<32x1xf32>
    %24 = vector.extract_strided_slice %9 {offsets = [2, 0], sizes = [1, 512], strides = [1, 1]} : vector<4x512xf32> to vector<1x512xf32>
    %25 = vector.broadcast %23 : vector<32x1xf32> to vector<32x512xf32>
    %26 = vector.broadcast %24 : vector<1x512xf32> to vector<32x512xf32>
    %27 = arith.mulf %25, %26 : vector<32x512xf32>
    %28 = arith.addf %22, %27 : vector<32x512xf32>
    %29 = vector.extract_strided_slice %0 {offsets = [0, 3], sizes = [32, 1], strides = [1, 1]} : vector<32x4xf32> to vector<32x1xf32>
    %30 = vector.extract_strided_slice %9 {offsets = [3, 0], sizes = [1, 512], strides = [1, 1]} : vector<4x512xf32> to vector<1x512xf32>
    %31 = vector.broadcast %29 : vector<32x1xf32> to vector<32x512xf32>
    %32 = vector.broadcast %30 : vector<1x512xf32> to vector<32x512xf32>
    %33 = arith.mulf %31, %32 : vector<32x512xf32>
    %34 = arith.addf %28, %33 : vector<32x512xf32>
    %cst = arith.constant 0.000000e+00 : f32
    %35 = vector.broadcast %cst : f32 to vector<32x512xf32>
    %36 = arith.maximumf %34, %35 : vector<32x512xf32>
    %cst_12 = arith.constant dense<0.000000e+00> : vector<32x512xf32>
    %37 = tpu.matmul %2, %36, %cst_12 {dimension_numbers = #tpu.dot_dimension_numbers<[1], [0], [0], [1], [0, 0, 1, 1], [], []>} : vector<32x32xf32>, vector<32x512xf32>, vector<32x512xf32> -> vector<32x512xf32>
    %38 = vector.broadcast %3 : vector<32x1xf32> to vector<32x512xf32>
    %39 = arith.addf %37, %38 : vector<32x512xf32>
    %cst_13 = arith.constant 0.000000e+00 : f32
    %40 = vector.broadcast %cst_13 : f32 to vector<32x512xf32>
    %41 = arith.maximumf %39, %40 : vector<32x512xf32>
    %42 = vector.broadcast %4 : vector<32x1xf32> to vector<32x512xf32>
    %43 = arith.mulf %42, %41 : vector<32x512xf32>
    %cst_14 = arith.constant dense<0.000000e+00> : vector<512xf32>
    %44 = vector.multi_reduction <add>, %43, %cst_14 [0] : vector<32x512xf32> to vector<512xf32>
    %45 = vector.shape_cast %44 : vector<512xf32> to vector<1x512xf32>
    %46 = vector.broadcast %5 : f32 to vector<1x512xf32>
    %47 = arith.addf %45, %46 : vector<1x512xf32>
    %c0_15 = arith.constant 0 : index
    %48 = arith.index_cast %7 : i32 to index
    %49 = vector.load %arg8[%c0_15, %48] : memref<1x512xf32, #tpu.memory_space<vmem>>, vector<1x512xf32>
    tpu.vector_store %arg8[%c0_15, %48], %47 {strides = array<i32>} : memref<1x512xf32, #tpu.memory_space<vmem>>, vector<1x512xf32>,
    %c1_i32 = arith.constant 1 : i32
    return
  }
  func.func @transform_0(%arg0: i32) -> (i32, i32) {
    %c0_i32 = arith.constant 0 : i32
    %c0_i32_0 = arith.constant 0 : i32
    return %c0_i32, %arg0 : i32, i32
  }
  func.func @transform_1(%arg0: i32) -> (i32, i32) {
    %c0_i32 = arith.constant 0 : i32
    %c0_i32_0 = arith.constant 0 : i32
    %c0_i32_1 = arith.constant 0 : i32
    return %c0_i32, %c0_i32_0 : i32, i32
  }
  func.func @transform_2(%arg0: i32) -> (i32, i32) {
    %c0_i32 = arith.constant 0 : i32
    %c0_i32_0 = arith.constant 0 : i32
    %c0_i32_1 = arith.constant 0 : i32
    return %c0_i32, %c0_i32_0 : i32, i32
  }
  func.func @transform_3(%arg0: i32) -> (i32, i32) {
    %c0_i32 = arith.constant 0 : i32
    %c0_i32_0 = arith.constant 0 : i32
    %c0_i32_1 = arith.constant 0 : i32
    return %c0_i32, %c0_i32_0 : i32, i32
  }
  func.func @transform_4(%arg0: i32) -> (i32, i32) {
    %c0_i32 = arith.constant 0 : i32
    %c0_i32_0 = arith.constant 0 : i32
    %c0_i32_1 = arith.constant 0 : i32
    return %c0_i32, %c0_i32_0 : i32, i32
  }
  func.func @transform_5(%arg0: i32) -> (i32, i32) {
    %c0_i32 = arith.constant 0 : i32
    %c0_i32_0 = arith.constant 0 : i32
    %c0_i32_1 = arith.constant 0 : i32
    return %c0_i32, %c0_i32_0 : i32, i32
  }
  func.func @transform_6(%arg0: i32) -> (i32, i32) {
    %c0_i32 = arith.constant 0 : i32
    %c0_i32_0 = arith.constant 0 : i32
    %c0_i32_1 = arith.constant 0 : i32
    return %c0_i32, %c0_i32_0 : i32, i32
  }
  func.func @transform_7(%arg0: i32) -> (i32, i32) {
    %c0_i32 = arith.constant 0 : i32
    %c0_i32_0 = arith.constant 0 : i32
    return %c0_i32, %arg0 : i32, i32
  }
}

</mosaic_0001>

<llo_original>
// kernel: tpu_custom_call.1
$region0: #{tpu_custom_call.1}
  #allocation0 [shape = 'u32[]', space=smem, size = 0x4, offset = 0x4, fixed_abs, tag = 'smem constant byte address 0x4 - core index']
  #allocation1 [shape = 'u32[144,128]{1,0:T(1,128)}', space=vmem, size = 0x12000, scoped, tag = 'internal scratch']
  #allocation2 [shape = 'f32[1,1]{1,0:T(1,128)S(6)}', space=smem, size = 0x200, scoped, tag = 'scoped memory for tpu_custom_call.1']
  %s0 = inlined_call_operand.vmem [shape: f32[4,512], index: 0, kind: input, shape index: {}]
  %s1 = inlined_call_operand.vmem [shape: f32[32,4], index: 1, kind: input, shape index: {}]
  %s2 = inlined_call_operand.vmem [shape: f32[32,1], index: 2, kind: input, shape index: {}]
  %s3 = inlined_call_operand.vmem [shape: f32[32,32], index: 3, kind: input, shape index: {}]
  %s4 = inlined_call_operand.vmem [shape: f32[32,1], index: 4, kind: input, shape index: {}]
  %s5 = inlined_call_operand.vmem [shape: f32[32,1], index: 5, kind: input, shape index: {}]
  %s6 = inlined_call_operand.<no memory space> [shape: f32[1,1], index: 6, kind: input, shape index: {}]
  %s7 = inlined_call_operand.hbm [shape: f32[1,512], index: 7, kind: output, shape index: {}]
  %s8 = sld [smem:[#allocation0]]
  $region38: #{tpu_custom_call.1} parent=0
    _
  %s10 = ssub.s32 1, %s8
  %s11 = scalar_select 0, %s10, %s8
  %12 = sst [smem:[#allocation2]] %s6
  $region1: #{tpu_custom_call.1} parent=0
    #allocation3 [shape = 'u8[2048]{0}', space=vmem, size = 0x800, scoped, tag = 'output window, operand 0, single buffered']
    #allocation4 [shape = 's32[1]{0}', space=sflag, size = 0x4, scoped, tag = 'scoped memory for tpu_custom_call.1']
    %13 = vsyncpa [#allocation4], 0
    // Predicated region
    $region2: #{tpu_custom_call.1} parent=1 // pred_check
      _
    $region3: #{tpu_custom_call.1} parent=1 // pred_check_branch
      %15 = sbr.rel (0) target = $region5
    $region4: #{tpu_custom_call.1} parent=1 // pred_region
      _
    $region5: #{tpu_custom_call.1} parent=1 // pred_fallthru
      _
    // Predicated region
    $region6: #{tpu_custom_call.1} parent=1 // pred_check
      _
    $region7: #{tpu_custom_call.1} parent=1 // pred_check_branch
      %17 = sbr.rel (0) target = $region9
    $region8: #{tpu_custom_call.1} parent=1 // pred_region
      _
    $region9: #{tpu_custom_call.1} parent=1 // pred_fallthru
      _
    // Predicated region
    $region10: #{tpu_custom_call.1} parent=1 // pred_check
      _
    $region11: #{tpu_custom_call.1} parent=1 // pred_check_branch
      %19 = sbr.rel (0) target = $region13
    $region12: #{tpu_custom_call.1} parent=1 // pred_region
      _
    $region13: #{tpu_custom_call.1} parent=1 // pred_fallthru
      _
    // Predicated region
    $region14: #{tpu_custom_call.1} parent=1 // pred_check
      _
    $region15: #{tpu_custom_call.1} parent=1 // pred_check_branch
      %21 = sbr.rel (0) target = $region17
    $region16: #{tpu_custom_call.1} parent=1 // pred_region
      _
    $region17: #{tpu_custom_call.1} parent=1 // pred_fallthru
      _
    // Predicated region
    $region18: #{tpu_custom_call.1} parent=1 // pred_check
      _
    $region19: #{tpu_custom_call.1} parent=1 // pred_check_branch
      %23 = sbr.rel (0) target = $region21
    $region20: #{tpu_custom_call.1} parent=1 // pred_region
      _
    $region21: #{tpu_custom_call.1} parent=1 // pred_fallthru
      _
    // Predicated region
    $region22: #{tpu_custom_call.1} parent=1 // pred_check
      _
    $region23: #{tpu_custom_call.1} parent=1 // pred_check_branch
      %25 = sbr.rel (0) target = $region25
    $region24: #{tpu_custom_call.1} parent=1 // pred_region
      _
    $region25: #{tpu_custom_call.1} parent=1 // pred_fallthru
      _
    // Predicated region
    $region26: #{tpu_custom_call.1} parent=1 // pred_check
      _
    $region27: #{tpu_custom_call.1} parent=1 // pred_check_branch
      %27 = sbr.rel (0) target = $region29
    $region28: #{tpu_custom_call.1} parent=1 // pred_region
      _
    $region29: #{tpu_custom_call.1} parent=1 // pred_fallthru
      _
    %v28 = vld [vmem:[%s1] sm:$0xff]
    %v29 = vld [vmem:[%s1 + $0x8] sm:$0xff]
    %v30 = vld [vmem:[%s1 + $0x10] sm:$0xff]
    %v31 = vld [vmem:[%s1 + $0x18] sm:$0xff]
    %v32 = vld [vmem:[%s2] sm:$0xff]
    %v33 = vld [vmem:[%s2 + $0x8] sm:$0xff]
    %v34 = vld [vmem:[%s2 + $0x10] sm:$0xff]
    %v35 = vld [vmem:[%s2 + $0x18] sm:$0xff]
    %v36 = vld [vmem:[%s3] sm:$0xff]
    %v37 = vld [vmem:[%s3 + $0x8] sm:$0xff]
    %v38 = vld [vmem:[%s3 + $0x10] sm:$0xff]
    %v39 = vld [vmem:[%s3 + $0x18] sm:$0xff]
    %v40 = vld [vmem:[%s4] sm:$0xff]
    %v41 = vld [vmem:[%s4 + $0x8] sm:$0xff]
    %v42 = vld [vmem:[%s4 + $0x10] sm:$0xff]
    %v43 = vld [vmem:[%s4 + $0x18] sm:$0xff]
    %v44 = vld [vmem:[%s5] sm:$0xff]
    %v45 = vld [vmem:[%s5 + $0x8] sm:$0xff]
    %v46 = vld [vmem:[%s5 + $0x10] sm:$0xff]
    %v47 = vld [vmem:[%s5 + $0x18] sm:$0xff]
    %s48 = sld [smem:[#allocation2]]
    %v49 = vld [vmem:[%s0] sm:$0xff]
    %v50 = vld [vmem:[%s0 + $0x8] sm:$0xff]
    %52 = vset.pattern.permute.xlu0 0
    %53 = vperm.xlu0 %52, %v28
    %v54 = vpop.permute.xlu0 %53
    %57 = vset.pattern.permute.xlu0 0
    %58 = vperm.xlu0 %57, %v29
    %v59 = vpop.permute.xlu0 %58
    %62 = vset.pattern.permute.xlu0 0
    %63 = vperm.xlu0 %62, %v30
    %v64 = vpop.permute.xlu0 %63
    %67 = vset.pattern.permute.xlu0 0
    %68 = vperm.xlu0 %67, %v31
    %v69 = vpop.permute.xlu0 %68
    %v73 = vlaneseq
    %v74 = vshrl.u32 %v73, 7
    %v75 = vsub.s32 0, %v74
    %v76 = vrot.slane %v49, %v75
    %v77 = vlaneseq
    %v78 = vshrl.u32 %v77, 7
    %v79 = vsub.s32 4, %v78
    %v80 = vrot.slane %v49, %v79
    %v81 = vlaneseq
    %v82 = vshrl.u32 %v81, 7
    %v83 = vsub.s32 0, %v82
    %v84 = vrot.slane %v50, %v83
    %v85 = vlaneseq
    %v86 = vshrl.u32 %v85, 7
    %v87 = vsub.s32 4, %v86
    %v88 = vrot.slane %v50, %v87
    %v93 = vlaneseq
    %v94 = vshrl.u32 %v93, 7
    %v95 = vsub.s32 0, %v94
    %v96 = vrot.slane %v76, %v95
    %v97 = vlaneseq
    %v98 = vshrl.u32 %v97, 7
    %v99 = vsub.s32 0, %v98
    %v100 = vrot.slane %v80, %v99
    %v101 = vlaneseq
    %v102 = vshrl.u32 %v101, 7
    %v103 = vsub.s32 0, %v102
    %v104 = vrot.slane %v84, %v103
    %v105 = vlaneseq
    %v106 = vshrl.u32 %v105, 7
    %v107 = vsub.s32 0, %v106
    %v108 = vrot.slane %v88, %v107
    %v109 = vmul.f32 %v54, %v96
    %v110 = vmul.f32 %v54, %v100
    %v111 = vmul.f32 %v54, %v104
    %v112 = vmul.f32 %v54, %v108
    %v113 = vmul.f32 %v59, %v96
    %v114 = vmul.f32 %v59, %v100
    %v115 = vmul.f32 %v59, %v104
    %v116 = vmul.f32 %v59, %v108
    %v117 = vmul.f32 %v64, %v96
    %v118 = vmul.f32 %v64, %v100
    %v119 = vmul.f32 %v64, %v104
    %v120 = vmul.f32 %v64, %v108
    %v121 = vmul.f32 %v69, %v96
    %v122 = vmul.f32 %v69, %v100
    %v123 = vmul.f32 %v69, %v104
    %v124 = vmul.f32 %v69, %v108
    %126 = vset.pattern.permute.xlu0 0
    %127 = vperm.xlu0 %126, %v32
    %v128 = vpop.permute.xlu0 %127
    %131 = vset.pattern.permute.xlu0 0
    %132 = vperm.xlu0 %131, %v33
    %v133 = vpop.permute.xlu0 %132
    %136 = vset.pattern.permute.xlu0 0
    %137 = vperm.xlu0 %136, %v34
    %v138 = vpop.permute.xlu0 %137
    %141 = vset.pattern.permute.xlu0 0
    %142 = vperm.xlu0 %141, %v35
    %v143 = vpop.permute.xlu0 %142
    %v145 = vadd.f32 %v128, %v109
    %v146 = vadd.f32 %v128, %v110
    %v147 = vadd.f32 %v128, %v111
    %v148 = vadd.f32 %v128, %v112
    %v149 = vadd.f32 %v133, %v113
    %v150 = vadd.f32 %v133, %v114
    %v151 = vadd.f32 %v133, %v115
    %v152 = vadd.f32 %v133, %v116
    %v153 = vadd.f32 %v138, %v117
    %v154 = vadd.f32 %v138, %v118
    %v155 = vadd.f32 %v138, %v119
    %v156 = vadd.f32 %v138, %v120
    %v157 = vadd.f32 %v143, %v121
    %v158 = vadd.f32 %v143, %v122
    %v159 = vadd.f32 %v143, %v123
    %v160 = vadd.f32 %v143, %v124
    %161 = vset.pattern.permute.xlu0 1
    %162 = vperm.xlu0 %161, %v28
    %v163 = vpop.permute.xlu0 %162
    %165 = vset.pattern.permute.xlu0 1
    %166 = vperm.xlu0 %165, %v29
    %v167 = vpop.permute.xlu0 %166
    %169 = vset.pattern.permute.xlu0 1
    %170 = vperm.xlu0 %169, %v30
    %v171 = vpop.permute.xlu0 %170
    %173 = vset.pattern.permute.xlu0 1
    %174 = vperm.xlu0 %173, %v31
    %v175 = vpop.permute.xlu0 %174
    %v177 = vlaneseq
    %v178 = vshrl.u32 %v177, 7
    %v179 = vsub.s32 1, %v178
    %v180 = vrot.slane %v49, %v179
    %v181 = vlaneseq
    %v182 = vshrl.u32 %v181, 7
    %v183 = vsub.s32 5, %v182
    %v184 = vrot.slane %v49, %v183
    %v185 = vlaneseq
    %v186 = vshrl.u32 %v185, 7
    %v187 = vsub.s32 1, %v186
    %v188 = vrot.slane %v50, %v187
    %v189 = vlaneseq
    %v190 = vshrl.u32 %v189, 7
    %v191 = vsub.s32 5, %v190
    %v192 = vrot.slane %v50, %v191
    %v197 = vlaneseq
    %v198 = vshrl.u32 %v197, 7
    %v199 = vsub.s32 1, %v198
    %v200 = vrot.slane %v180, %v199
    %v201 = vlaneseq
    %v202 = vshrl.u32 %v201, 7
    %v203 = vsub.s32 1, %v202
    %v204 = vrot.slane %v184, %v203
    %v205 = vlaneseq
    %v206 = vshrl.u32 %v205, 7
    %v207 = vsub.s32 1, %v206
    %v208 = vrot.slane %v188, %v207
    %v209 = vlaneseq
    %v210 = vshrl.u32 %v209, 7
    %v211 = vsub.s32 1, %v210
    %v212 = vrot.slane %v192, %v211
    %v213 = vmul.f32 %v163, %v200
    %v214 = vmul.f32 %v163, %v204
    %v215 = vmul.f32 %v163, %v208
    %v216 = vmul.f32 %v163, %v212
    %v217 = vmul.f32 %v167, %v200
    %v218 = vmul.f32 %v167, %v204
    %v219 = vmul.f32 %v167, %v208
    %v220 = vmul.f32 %v167, %v212
    %v221 = vmul.f32 %v171, %v200
    %v222 = vmul.f32 %v171, %v204
    %v223 = vmul.f32 %v171, %v208
    %v224 = vmul.f32 %v171, %v212
    %v225 = vmul.f32 %v175, %v200
    %v226 = vmul.f32 %v175, %v204
    %v227 = vmul.f32 %v175, %v208
    %v228 = vmul.f32 %v175, %v212
    %v229 = vadd.f32 %v145, %v213
    %v230 = vadd.f32 %v146, %v214
    %v231 = vadd.f32 %v147, %v215
    %v232 = vadd.f32 %v148, %v216
    %v233 = vadd.f32 %v149, %v217
    %v234 = vadd.f32 %v150, %v218
    %v235 = vadd.f32 %v151, %v219
    %v236 = vadd.f32 %v152, %v220
    %v237 = vadd.f32 %v153, %v221
    %v238 = vadd.f32 %v154, %v222
    %v239 = vadd.f32 %v155, %v223
    %v240 = vadd.f32 %v156, %v224
    %v241 = vadd.f32 %v157, %v225
    %v242 = vadd.f32 %v158, %v226
    %v243 = vadd.f32 %v159, %v227
    %v244 = vadd.f32 %v160, %v228
    %245 = vset.pattern.permute.xlu0 2
    %246 = vperm.xlu0 %245, %v28
    %v247 = vpop.permute.xlu0 %246
    %249 = vset.pattern.permute.xlu0 2
    %250 = vperm.xlu0 %249, %v29
    %v251 = vpop.permute.xlu0 %250
    %253 = vset.pattern.permute.xlu0 2
    %254 = vperm.xlu0 %253, %v30
    %v255 = vpop.permute.xlu0 %254
    %257 = vset.pattern.permute.xlu0 2
    %258 = vperm.xlu0 %257, %v31
    %v259 = vpop.permute.xlu0 %258
    %v261 = vlaneseq
    %v262 = vshrl.u32 %v261, 7
    %v263 = vsub.s32 2, %v262
    %v264 = vrot.slane %v49, %v263
    %v265 = vlaneseq
    %v266 = vshrl.u32 %v265, 7
    %v267 = vsub.s32 6, %v266
    %v268 = vrot.slane %v49, %v267
    %v269 = vlaneseq
    %v270 = vshrl.u32 %v269, 7
    %v271 = vsub.s32 2, %v270
    %v272 = vrot.slane %v50, %v271
    %v273 = vlaneseq
    %v274 = vshrl.u32 %v273, 7
    %v275 = vsub.s32 6, %v274
    %v276 = vrot.slane %v50, %v275
    %v281 = vlaneseq
    %v282 = vshrl.u32 %v281, 7
    %v283 = vsub.s32 2, %v282
    %v284 = vrot.slane %v264, %v283
    %v285 = vlaneseq
    %v286 = vshrl.u32 %v285, 7
    %v287 = vsub.s32 2, %v286
    %v288 = vrot.slane %v268, %v287
    %v289 = vlaneseq
    %v290 = vshrl.u32 %v289, 7
    %v291 = vsub.s32 2, %v290
    %v292 = vrot.slane %v272, %v291
    %v293 = vlaneseq
    %v294 = vshrl.u32 %v293, 7
    %v295 = vsub.s32 2, %v294
    %v296 = vrot.slane %v276, %v295
    %v297 = vmul.f32 %v247, %v284
    %v298 = vmul.f32 %v247, %v288
    %v299 = vmul.f32 %v247, %v292
    %v300 = vmul.f32 %v247, %v296
    %v301 = vmul.f32 %v251, %v284
    %v302 = vmul.f32 %v251, %v288
    %v303 = vmul.f32 %v251, %v292
    %v304 = vmul.f32 %v251, %v296
    %v305 = vmul.f32 %v255, %v284
    %v306 = vmul.f32 %v255, %v288
    %v307 = vmul.f32 %v255, %v292
    %v308 = vmul.f32 %v255, %v296
    %v309 = vmul.f32 %v259, %v284
    %v310 = vmul.f32 %v259, %v288
    %v311 = vmul.f32 %v259, %v292
    %v312 = vmul.f32 %v259, %v296
    %v313 = vadd.f32 %v229, %v297
    %v314 = vadd.f32 %v230, %v298
    %v315 = vadd.f32 %v231, %v299
    %v316 = vadd.f32 %v232, %v300
    %v317 = vadd.f32 %v233, %v301
    %v318 = vadd.f32 %v234, %v302
    %v319 = vadd.f32 %v235, %v303
    %v320 = vadd.f32 %v236, %v304
    %v321 = vadd.f32 %v237, %v305
    %v322 = vadd.f32 %v238, %v306
    %v323 = vadd.f32 %v239, %v307
    %v324 = vadd.f32 %v240, %v308
    %v325 = vadd.f32 %v241, %v309
    %v326 = vadd.f32 %v242, %v310
    %v327 = vadd.f32 %v243, %v311
    %v328 = vadd.f32 %v244, %v312
    %329 = vset.pattern.permute.xlu0 3
    %330 = vperm.xlu0 %329, %v28
    %v331 = vpop.permute.xlu0 %330
    %333 = vset.pattern.permute.xlu0 3
    %334 = vperm.xlu0 %333, %v29
    %v335 = vpop.permute.xlu0 %334
    %337 = vset.pattern.permute.xlu0 3
    %338 = vperm.xlu0 %337, %v30
    %v339 = vpop.permute.xlu0 %338
    %341 = vset.pattern.permute.xlu0 3
    %342 = vperm.xlu0 %341, %v31
    %v343 = vpop.permute.xlu0 %342
    %v345 = vlaneseq
    %v346 = vshrl.u32 %v345, 7
    %v347 = vsub.s32 3, %v346
    %v348 = vrot.slane %v49, %v347
    %v349 = vlaneseq
    %v350 = vshrl.u32 %v349, 7
    %v351 = vsub.s32 7, %v350
    %v352 = vrot.slane %v49, %v351
    %v353 = vlaneseq
    %v354 = vshrl.u32 %v353, 7
    %v355 = vsub.s32 3, %v354
    %v356 = vrot.slane %v50, %v355
    %v357 = vlaneseq
    %v358 = vshrl.u32 %v357, 7
    %v359 = vsub.s32 7, %v358
    %v360 = vrot.slane %v50, %v359
    %v365 = vlaneseq
    %v366 = vshrl.u32 %v365, 7
    %v367 = vsub.s32 3, %v366
    %v368 = vrot.slane %v348, %v367
    %v369 = vlaneseq
    %v370 = vshrl.u32 %v369, 7
    %v371 = vsub.s32 3, %v370
    %v372 = vrot.slane %v352, %v371
    %v373 = vlaneseq
    %v374 = vshrl.u32 %v373, 7
    %v375 = vsub.s32 3, %v374
    %v376 = vrot.slane %v356, %v375
    %v377 = vlaneseq
    %v378 = vshrl.u32 %v377, 7
    %v379 = vsub.s32 3, %v378
    %v380 = vrot.slane %v360, %v379
    %v381 = vmul.f32 %v331, %v368
    %v382 = vmul.f32 %v331, %v372
    %v383 = vmul.f32 %v331, %v376
    %v384 = vmul.f32 %v331, %v380
    %v385 = vmul.f32 %v335, %v368
    %v386 = vmul.f32 %v335, %v372
    %v387 = vmul.f32 %v335, %v376
    %v388 = vmul.f32 %v335, %v380
    %v389 = vmul.f32 %v339, %v368
    %v390 = vmul.f32 %v339, %v372
    %v391 = vmul.f32 %v339, %v376
    %v392 = vmul.f32 %v339, %v380
    %v393 = vmul.f32 %v343, %v368
    %v394 = vmul.f32 %v343, %v372
    %v395 = vmul.f32 %v343, %v376
    %v396 = vmul.f32 %v343, %v380
    %v397 = vadd.f32 %v313, %v381
    %v398 = vadd.f32 %v314, %v382
    %v399 = vadd.f32 %v315, %v383
    %v400 = vadd.f32 %v316, %v384
    %v401 = vadd.f32 %v317, %v385
    %v402 = vadd.f32 %v318, %v386
    %v403 = vadd.f32 %v319, %v387
    %v404 = vadd.f32 %v320, %v388
    %v405 = vadd.f32 %v321, %v389
    %v406 = vadd.f32 %v322, %v390
    %v407 = vadd.f32 %v323, %v391
    %v408 = vadd.f32 %v324, %v392
    %v409 = vadd.f32 %v325, %v393
    %v410 = vadd.f32 %v326, %v394
    %v411 = vadd.f32 %v327, %v395
    %v412 = vadd.f32 %v328, %v396
    %v413 = vmax.f32 %v397, 0.0
    %v414 = vmax.f32 %v398, 0.0
    %v415 = vmax.f32 %v399, 0.0
    %v416 = vmax.f32 %v400, 0.0
    %v417 = vmax.f32 %v401, 0.0
    %v418 = vmax.f32 %v402, 0.0
    %v419 = vmax.f32 %v403, 0.0
    %v420 = vmax.f32 %v404, 0.0
    %v421 = vmax.f32 %v405, 0.0
    %v422 = vmax.f32 %v406, 0.0
    %v423 = vmax.f32 %v407, 0.0
    %v424 = vmax.f32 %v408, 0.0
    %v425 = vmax.f32 %v409, 0.0
    %v426 = vmax.f32 %v410, 0.0
    %v427 = vmax.f32 %v411, 0.0
    %v428 = vmax.f32 %v412, 0.0
    %430 = vset.pattern.permute.xlu0 0
    %431 = vperm.xlu0 %430, %v40
    %v432 = vpop.permute.xlu0 %431
    %435 = vset.pattern.permute.xlu0 0
    %436 = vperm.xlu0 %435, %v41
    %v437 = vpop.permute.xlu0 %436
    %440 = vset.pattern.permute.xlu0 0
    %441 = vperm.xlu0 %440, %v42
    %v442 = vpop.permute.xlu0 %441
    %445 = vset.pattern.permute.xlu0 0
    %446 = vperm.xlu0 %445, %v43
    %v447 = vpop.permute.xlu0 %446
    %vm449 = vcmask 261120
    %v451 = vsel %vm449, %v36, 0
    %v454 = vsel %vm449, %v37, 0
    %v457 = vsel %vm449, %v38, 0
    %v460 = vsel %vm449, %v39, 0
    %462 = vmatprep.subr.mxu0 %v414
    %463 = vmatpush1.msra.mxu0 %v413
    %464 = vmatprep.subr.mxu0 %v418
    %465 = vmatpush1.msra.mxu0 %v417
    %466 = vmatprep.subr.mxu0 %v422
    %467 = vmatpush1.msra.mxu0 %v421
    %468 = vmatprep.subr.mxu0 %v426
    %469 = vmatpush1.msra.mxu0 %v425
    %470 = vmatprep.subr.mxu0 0.0
    %471 = vmatpush1.msra.mxu0 0.0
    %472 = vmatprep.subr.mxu0 0.0
    %473 = vmatpush1.msra.mxu0 0.0
    %474 = vmatprep.subr.mxu0 0.0
    %475 = vmatpush1.msra.mxu0 0.0
    %476 = vmatprep.subr.mxu0 0.0
    %477 = vmatpush1.msra.mxu0 0.0
    %478 = vmatprep.subr.mxu0 0.0
    %479 = vmatpush1.msra.mxu0 0.0
    %480 = vmatprep.subr.mxu0 0.0
    %481 = vmatpush1.msra.mxu0 0.0
    %482 = vmatprep.subr.mxu0 0.0
    %483 = vmatpush1.msra.mxu0 0.0
    %484 = vmatprep.subr.mxu0 0.0
    %485 = vmatpush1.msra.mxu0 0.0
    %486 = vmatprep.subr.mxu0 0.0
    %487 = vmatpush1.msra.mxu0 0.0
    %488 = vmatprep.subr.mxu0 0.0
    %489 = vmatpush1.msra.mxu0 0.0
    %490 = vmatprep.subr.mxu0 0.0
    %491 = vmatpush1.msra.mxu0 0.0
    %492 = vmatprep.subr.mxu0 0.0
    %493 = vmatpush1.msra.mxu0 0.0
    %494 = vmatprep.subr.mxu0 0.0
    %495 = vmatpush1.msra.mxu0 0.0
    %496 = vmatprep.subr.mxu0 0.0
    %497 = vmatpush1.msra.mxu0 0.0
    %498 = vmatprep.subr.mxu0 0.0
    %499 = vmatpush1.msra.mxu0 0.0
    %500 = vmatprep.subr.mxu0 0.0
    %501 = vmatpush1.msra.mxu0 0.0
    %502 = vmatprep.subr.mxu0 0.0
    %503 = vmatpush1.msra.mxu0 0.0
    %504 = vmatprep.subr.mxu0 0.0
    %505 = vmatpush1.msra.mxu0 0.0
    %506 = vmatprep.subr.mxu0 0.0
    %507 = vmatpush1.msra.mxu0 0.0
    %508 = vmatprep.subr.mxu0 0.0
    %509 = vmatpush1.msra.mxu0 0.0
    %510 = vmatprep.subr.mxu0 0.0
    %511 = vmatpush1.msra.mxu0 0.0
    %512 = vmatprep.subr.mxu0 0.0
    %513 = vmatpush1.msra.mxu0 0.0
    %514 = vmatprep.subr.mxu0 0.0
    %515 = vmatpush1.msra.mxu0 0.0
    %516 = vmatprep.subr.mxu0 0.0
    %517 = vmatpush1.msra.mxu0 0.0
    %518 = vmatprep.subr.mxu0 0.0
    %519 = vmatpush1.msra.mxu0 0.0
    %520 = vmatprep.subr.mxu0 0.0
    %521 = vmatpush1.msra.mxu0 0.0
    %522 = vmatprep.subr.mxu0 0.0
    %523 = vmatpush1.msra.mxu0 0.0
    %524 = vmatprep.subr.mxu0 0.0
    %525 = vmatpush1.msra.mxu0 0.0
    %526 = vmatprep.mubr.f32.mxu0 0.0
    %527 = vmatmul.mubr.f32.gmra.mrb[0].mxu0 %v451
    %v528 = vpop.f32.mrb[0].mxu0
    %v529 = vadd.f32 %v432, %v528
    %v530 = vpop.f32.mrb[0].mxu0
    %v531 = vadd.f32 %v432, %v530
    %532 = vmatprep.mubr.f32.mxu0 0.0
    %533 = vmatmul.mubr.f32.gmra.mrb[0].mxu0 %v454
    %v534 = vpop.f32.mrb[0].mxu0
    %v535 = vadd.f32 %v437, %v534
    %v536 = vpop.f32.mrb[0].mxu0
    %v537 = vadd.f32 %v437, %v536
    %538 = vmatprep.mubr.f32.mxu0 0.0
    %539 = vmatmul.mubr.f32.gmra.mrb[0].mxu0 %v457
    %v540 = vpop.f32.mrb[0].mxu0
    %v541 = vadd.f32 %v442, %v540
    %v542 = vpop.f32.mrb[0].mxu0
    %v543 = vadd.f32 %v442, %v542
    %544 = vmatprep.mubr.f32.mxu0 0.0
    %545 = vmatmul.mubr.f32.gmra.mrb[0].mxu0 %v460
    %v546 = vpop.f32.mrb[0].mxu0
    %v547 = vadd.f32 %v447, %v546
    %v548 = vpop.f32.mrb[0].mxu0
    %v549 = vadd.f32 %v447, %v548
    %550 = vdwg.mxu0
    %551 = vmatprep.subr.mxu0 %v416
    %552 = vmatpush1.msra.mxu0 %v415
    %553 = vmatprep.subr.mxu0 %v420
    %554 = vmatpush1.msra.mxu0 %v419
    %555 = vmatprep.subr.mxu0 %v424
    %556 = vmatpush1.msra.mxu0 %v423
    %557 = vmatprep.subr.mxu0 %v428
    %558 = vmatpush1.msra.mxu0 %v427
    %559 = vmatprep.subr.mxu0 0.0
    %560 = vmatpush1.msra.mxu0 0.0
    %561 = vmatprep.subr.mxu0 0.0
    %562 = vmatpush1.msra.mxu0 0.0
    %563 = vmatprep.subr.mxu0 0.0
    %564 = vmatpush1.msra.mxu0 0.0
    %565 = vmatprep.subr.mxu0 0.0
    %566 = vmatpush1.msra.mxu0 0.0
    %567 = vmatprep.subr.mxu0 0.0
    %568 = vmatpush1.msra.mxu0 0.0
    %569 = vmatprep.subr.mxu0 0.0
    %570 = vmatpush1.msra.mxu0 0.0
    %571 = vmatprep.subr.mxu0 0.0
    %572 = vmatpush1.msra.mxu0 0.0
    %573 = vmatprep.subr.mxu0 0.0
    %574 = vmatpush1.msra.mxu0 0.0
    %575 = vmatprep.subr.mxu0 0.0
    %576 = vmatpush1.msra.mxu0 0.0
    %577 = vmatprep.subr.mxu0 0.0
    %578 = vmatpush1.msra.mxu0 0.0
    %579 = vmatprep.subr.mxu0 0.0
    %580 = vmatpush1.msra.mxu0 0.0
    %581 = vmatprep.subr.mxu0 0.0
    %582 = vmatpush1.msra.mxu0 0.0
    %583 = vmatprep.subr.mxu0 0.0
    %584 = vmatpush1.msra.mxu0 0.0
    %585 = vmatprep.subr.mxu0 0.0
    %586 = vmatpush1.msra.mxu0 0.0
    %587 = vmatprep.subr.mxu0 0.0
    %588 = vmatpush1.msra.mxu0 0.0
    %589 = vmatprep.subr.mxu0 0.0
    %590 = vmatpush1.msra.mxu0 0.0
    %591 = vmatprep.subr.mxu0 0.0
    %592 = vmatpush1.msra.mxu0 0.0
    %593 = vmatprep.subr.mxu0 0.0
    %594 = vmatpush1.msra.mxu0 0.0
    %595 = vmatprep.subr.mxu0 0.0
    %596 = vmatpush1.msra.mxu0 0.0
    %597 = vmatprep.subr.mxu0 0.0
    %598 = vmatpush1.msra.mxu0 0.0
    %599 = vmatprep.subr.mxu0 0.0
    %600 = vmatpush1.msra.mxu0 0.0
    %601 = vmatprep.subr.mxu0 0.0
    %602 = vmatpush1.msra.mxu0 0.0
    %603 = vmatprep.subr.mxu0 0.0
    %604 = vmatpush1.msra.mxu0 0.0
    %605 = vmatprep.subr.mxu0 0.0
    %606 = vmatpush1.msra.mxu0 0.0
    %607 = vmatprep.subr.mxu0 0.0
    %608 = vmatpush1.msra.mxu0 0.0
    %609 = vmatprep.subr.mxu0 0.0
    %610 = vmatpush1.msra.mxu0 0.0
    %611 = vmatprep.subr.mxu0 0.0
    %612 = vmatpush1.msra.mxu0 0.0
    %613 = vmatprep.subr.mxu0 0.0
    %614 = vmatpush1.msra.mxu0 0.0
    %615 = vmatprep.mubr.f32.mxu0 0.0
    %616 = vmatmul.mubr.f32.gmra.mrb[0].mxu0 %v451
    %v617 = vpop.f32.mrb[0].mxu0
    %v618 = vadd.f32 %v432, %v617
    %v619 = vpop.f32.mrb[0].mxu0
    %v620 = vadd.f32 %v432, %v619
    %621 = vmatprep.mubr.f32.mxu0 0.0
    %622 = vmatmul.mubr.f32.gmra.mrb[0].mxu0 %v454
    %v623 = vpop.f32.mrb[0].mxu0
    %v624 = vadd.f32 %v437, %v623
    %v625 = vpop.f32.mrb[0].mxu0
    %v626 = vadd.f32 %v437, %v625
    %627 = vmatprep.mubr.f32.mxu0 0.0
    %628 = vmatmul.mubr.f32.gmra.mrb[0].mxu0 %v457
    %v629 = vpop.f32.mrb[0].mxu0
    %v630 = vadd.f32 %v442, %v629
    %v631 = vpop.f32.mrb[0].mxu0
    %v632 = vadd.f32 %v442, %v631
    %633 = vmatprep.mubr.f32.mxu0 0.0
    %634 = vmatmul.mubr.f32.gmra.mrb[0].mxu0 %v460
    %v635 = vpop.f32.mrb[0].mxu0
    %v636 = vadd.f32 %v447, %v635
    %v637 = vpop.f32.mrb[0].mxu0
    %v638 = vadd.f32 %v447, %v637
    %639 = vdwg.mxu0
    %v640 = vmax.f32 %v529, 0.0
    %v641 = vmax.f32 %v531, 0.0
    %v642 = vmax.f32 %v618, 0.0
    %v643 = vmax.f32 %v620, 0.0
    %v644 = vmax.f32 %v535, 0.0
    %v645 = vmax.f32 %v537, 0.0
    %v646 = vmax.f32 %v624, 0.0
    %v647 = vmax.f32 %v626, 0.0
    %v648 = vmax.f32 %v541, 0.0
    %v649 = vmax.f32 %v543, 0.0
    %v650 = vmax.f32 %v630, 0.0
    %v651 = vmax.f32 %v632, 0.0
    %v652 = vmax.f32 %v547, 0.0
    %v653 = vmax.f32 %v549, 0.0
    %v654 = vmax.f32 %v636, 0.0
    %v655 = vmax.f32 %v638, 0.0
    %657 = vset.pattern.permute.xlu0 0
    %658 = vperm.xlu0 %657, %v44
    %v659 = vpop.permute.xlu0 %658
    %662 = vset.pattern.permute.xlu0 0
    %663 = vperm.xlu0 %662, %v45
    %v664 = vpop.permute.xlu0 %663
    %667 = vset.pattern.permute.xlu0 0
    %668 = vperm.xlu0 %667, %v46
    %v669 = vpop.permute.xlu0 %668
    %672 = vset.pattern.permute.xlu0 0
    %673 = vperm.xlu0 %672, %v47
    %v674 = vpop.permute.xlu0 %673
    %v676 = vmul.f32 %v659, %v640
    %v677 = vmul.f32 %v659, %v641
    %v678 = vmul.f32 %v659, %v642
    %v679 = vmul.f32 %v659, %v643
    %v680 = vmul.f32 %v664, %v644
    %v681 = vmul.f32 %v664, %v645
    %v682 = vmul.f32 %v664, %v646
    %v683 = vmul.f32 %v664, %v647
    %v684 = vmul.f32 %v669, %v648
    %v685 = vmul.f32 %v669, %v649
    %v686 = vmul.f32 %v669, %v650
    %v687 = vmul.f32 %v669, %v651
    %v688 = vmul.f32 %v674, %v652
    %v689 = vmul.f32 %v674, %v653
    %v690 = vmul.f32 %v674, %v654
    %v691 = vmul.f32 %v674, %v655
    %v692 = vadd.f32 %v676, %v680
    %v693 = vadd.f32 %v692, %v684
    %v694 = vadd.f32 %v693, %v688
    %v695 = vrot.slane %v694, 4
    %v696 = vadd.f32 %v694, %v695
    %v697 = vrot.slane %v696, 2
    %v698 = vadd.f32 %v696, %v697
    %v699 = vrot.slane %v698, 1
    %v700 = vadd.f32 %v698, %v699
    %v701 = vadd.f32 %v677, %v681
    %v702 = vadd.f32 %v701, %v685
    %v703 = vadd.f32 %v702, %v689
    %v704 = vrot.slane %v703, 4
    %v705 = vadd.f32 %v703, %v704
    %v706 = vrot.slane %v705, 2
    %v707 = vadd.f32 %v705, %v706
    %v708 = vrot.slane %v707, 1
    %v709 = vadd.f32 %v707, %v708
    %v710 = vadd.f32 %v678, %v682
    %v711 = vadd.f32 %v710, %v686
    %v712 = vadd.f32 %v711, %v690
    %v713 = vrot.slane %v712, 4
    %v714 = vadd.f32 %v712, %v713
    %v715 = vrot.slane %v714, 2
    %v716 = vadd.f32 %v714, %v715
    %v717 = vrot.slane %v716, 1
    %v718 = vadd.f32 %v716, %v717
    %v719 = vadd.f32 %v679, %v683
    %v720 = vadd.f32 %v719, %v687
    %v721 = vadd.f32 %v720, %v691
    %v722 = vrot.slane %v721, 4
    %v723 = vadd.f32 %v721, %v722
    %v724 = vrot.slane %v723, 2
    %v725 = vadd.f32 %v723, %v724
    %v726 = vrot.slane %v725, 1
    %v727 = vadd.f32 %v725, %v726
    %v728 = vstv %s48
    %v729 = vadd.f32 %v700, %v728
    %v730 = vadd.f32 %v709, %v728
    %v731 = vadd.f32 %v718, %v728
    %v732 = vadd.f32 %v727, %v728
    %v737 = vcombine.low %v729, %v730
    %v738 = vcombine.low %v731, %v732
    %v740 = vunpack.c.l.s4 1966171168
    %v741 = vunpack.c.0.s8 %v740
    %v742 = vlaneseq
    %v743 = vshrl.u32 %v742, 7
    %v744 = vsub.s32 %v741, %v743
    %v745 = vrot.slane %v737, %v744
    %v747 = vunpack.c.l.s4 1966171168
    %v748 = vunpack.c.0.s8 %v747
    %v749 = vlaneseq
    %v750 = vshrl.u32 %v749, 7
    %v751 = vsub.s32 %v748, %v750
    %v752 = vrot.slane %v738, %v751
    %v753 = vcombine.low %v745, %v752
    %v755 = vunpack.c.l.s4 1966171168
    %v756 = vunpack.c.0.s8 %v755
    %v757 = vlaneseq
    %v758 = vshrl.u32 %v757, 7
    %v759 = vsub.s32 %v756, %v758
    %v760 = vrot.slane %v753, %v759
    %v762 = vlaneseq
    %vm763 = vcmp.ge.s32.totalorder %v762, 0
    %vm764 = vcmp.lt.s32.totalorder %v762, 512
    %vm765 = vmand %vm763, %vm764
    %766 = vst.msk [vmem:[#allocation3] sm:$0xf] %vm765, %v760
    // Predicated region
    $region30: #{tpu_custom_call.1} parent=1 // pred_check
      _
    $region31: #{tpu_custom_call.1} parent=1 // pred_check_branch
      %768 = sbr.rel (0) target = $region33
    $region32: #{tpu_custom_call.1} parent=1 // pred_region
      %s770 = ssub.s32 64, 64
      %771 = vsyncadd [#allocation4], %s770
      %s773 = sshll.u32 [#allocation3], 4
      %s774 = int_to_ptr.vmem [resolvable:$true] %s773
      %776 = dma.vmem_to_hbm [thread:$0]  %s774, 64, %s7, [#allocation4]
    $region33: #{tpu_custom_call.1} parent=1 // pred_fallthru
      _
    // Predicated region
    $region34: #{tpu_custom_call.1} parent=1 // pred_check
      _
    $region35: #{tpu_custom_call.1} parent=1 // pred_check_branch
      %778 = sbr.rel (0) target = $region37
    $region36: #{tpu_custom_call.1} parent=1 // pred_region
      %779 = dma.done [#allocation4], 64
    $region37: #{tpu_custom_call.1} parent=1 // pred_fallthru
      _
    %780 = vsyncpa [#allocation4], 1

</llo_original>
